<compile_context>
chip_gen: v6e
topology: v6e:2x2x1
jax: 0.10.0
libtpu: 0.0.40
codegen_flags: <defaults>
</compile_context>

<pallas_src>
import jax
import jax.numpy as jnp
from jax.experimental import pallas as pl
from jax.experimental.pallas import tpu as pltpu


LANE = 128        # MXU / vreg lane width
SUBLANE = 8       # f32 sublane count (bias tiles)
BATCH_ALIGN = 16  # bf16 sublane packing: keep batch tiles multiples of 16


def _round_up(x: int, m: int) -> int:
    return ((x + m - 1) // m) * m


def _cdiv(a: int, b: int) -> int:
    return -(-a // b)


# --------------------------------------------------------------------------- #
# Kernel: one batch tile of the whole 3-layer MLP (fc1+ReLU, fc2+ReLU, fc3).
# x / w* are bf16 (MXU inputs); accumulation and bias/ReLU are f32.
# --------------------------------------------------------------------------- #
def qnet_kernel(x_ref, w1_ref, b1_ref, w2_ref, b2_ref, w3_ref, b3_ref, o_ref):
    x = x_ref[...]                                            # (tb, S) bf16

    # fc1 + ReLU  (biases replicated (8, F); row 0 broadcasts over batch)
    h1 = jnp.dot(x, w1_ref[...], preferred_element_type=jnp.float32)
    h1 = jnp.maximum(h1 + b1_ref[0:1, :], 0.0)                # f32

    # fc2 + ReLU
    h2 = jnp.dot(h1.astype(jnp.bfloat16), w2_ref[...],
                 preferred_element_type=jnp.float32)
    h2 = jnp.maximum(h2 + b2_ref[0:1, :], 0.0)                # f32

    # fc3 (no activation); bf16 lane-dense store
    out = jnp.dot(h2.astype(jnp.bfloat16), w3_ref[...],
                  preferred_element_type=jnp.float32)
    o_ref[...] = (out + b3_ref[0:1, :]).astype(o_ref.dtype)


# --------------------------------------------------------------------------- #
# Parameter padding / casting: done once, outside the kernel.
# Hidden/action dims zero-padded to 128 lanes (exact through bias+ReLU);
# weights cast to bf16, biases kept f32 and replicated to an 8-sublane tile.
# --------------------------------------------------------------------------- #
def pad_params(params):
    w1, b1 = params["w1"], params["b1"]
    w2, b2 = params["w2"], params["b2"]
    w3, b3 = params["w3"], params["b3"]

    S, H = w1.shape
    A = w3.shape[1]
    H_pad = _round_up(H, LANE)
    A_pad = _round_up(A, LANE)

    def pad_w(w, r, c):
        w = jnp.pad(w, ((0, r - w.shape[0]), (0, c - w.shape[1])))
        return w.astype(jnp.bfloat16)

    def pad_b(b, c):
        b = jnp.pad(b.reshape(1, -1), ((0, 0), (0, c - b.shape[-1])))
        return jnp.tile(b, (SUBLANE, 1)).astype(jnp.float32)

    return {
        "w1": pad_w(w1, S, H_pad), "b1": pad_b(b1, H_pad),       # state dim NOT padded
        "w2": pad_w(w2, H_pad, H_pad), "b2": pad_b(b2, H_pad),
        "w3": pad_w(w3, H_pad, A_pad), "b3": pad_b(b3, A_pad),
        "dims": (S, H, A, H_pad, A_pad),
    }


# --------------------------------------------------------------------------- #
# Wrapper: pads the batch, launches the batch-tiled kernel, slices output.
#   tile_b    : max rows per grid step (VMEM is a non-issue at these sizes).
#   min_steps : set to 2 on v7x for large batches so the "parallel" batch axis
#               actually occupies both TensorCores.
# --------------------------------------------------------------------------- #
def qnetwork_forward(x, padded_params, *, tile_b: int = 2048, min_steps: int = 1):
    S, H, A, H_pad, A_pad = padded_params["dims"]
    w1, b1 = padded_params["w1"], padded_params["b1"]
    w2, b2 = padded_params["w2"], padded_params["b2"]
    w3, b3 = padded_params["w3"], padded_params["b3"]

    B = x.shape[0]
    # Pick the number of steps first, then the smallest aligned tile covering
    # them -> B_pad never overshoots by ~tile_b for awkward batch sizes.
    n_steps = max(min_steps, _cdiv(B, max(tile_b, BATCH_ALIGN)))
    tb = _round_up(_cdiv(B, n_steps), BATCH_ALIGN)
    B_pad = _round_up(B, tb)
    grid = (B_pad // tb,)

    # Batch padded with zero rows (sliced off below); state dim left unpadded.
    x_p = jnp.pad(x, ((0, B_pad - B), (0, 0))).astype(jnp.bfloat16)

    # Weights/biases: constant index_map + single buffer -> VMEM-resident.
    const = lambda i: (0, 0)
    resident = lambda shape: pl.BlockSpec(shape, const, pipeline_mode=pl.Buffered(1))

    in_specs = [
        pl.BlockSpec((tb, S), lambda i: (i, 0)),   # x tile (streamed, pipelined)
        resident((S, H_pad)),                      # w1
        resident((SUBLANE, H_pad)),                # b1
        resident((H_pad, H_pad)),                  # w2
        resident((SUBLANE, H_pad)),                # b2
        resident((H_pad, A_pad)),                  # w3
        resident((SUBLANE, A_pad)),                # b3
    ]
    out_spec = pl.BlockSpec((tb, A_pad), lambda i: (i, 0))   # lane-dense bf16 out

    out_padded = pl.pallas_call(
        qnet_kernel,
        out_shape=jax.ShapeDtypeStruct((B_pad, A_pad), jnp.bfloat16),
        grid=grid,
        in_specs=in_specs,
        out_specs=out_spec,
        compiler_params=pltpu.CompilerParams(
            dimension_semantics=("parallel",),
        ),
    )(x_p, w1, b1, w2, b2, w3, b3)

    # Slice back to the true (B, action_size); return f32 like the torch module.
    return out_padded[:B, :A].astype(jnp.float32)


# --------------------------------------------------------------------------- #
# Init mimicking torch.nn.Linear default (U(-1/sqrt(fan_in), +1/sqrt(fan_in))).
# --------------------------------------------------------------------------- #
def init_params(key, state_size, action_size, hidden=64):
    def linear(key, fan_in, fan_out):
        kw, kb = jax.random.split(key)
        bound = 1.0 / jnp.sqrt(fan_in)
        w = jax.random.uniform(kw, (fan_in, fan_out), jnp.float32, -bound, bound)
        b = jax.random.uniform(kb, (1, fan_out), jnp.float32, -bound, bound)
        return w, b

    k1, k2, k3 = jax.random.split(key, 3)
    w1, b1 = linear(k1, state_size, hidden)
    w2, b2 = linear(k2, hidden, hidden)
    w3, b3 = linear(k3, hidden, action_size)
    return {"w1": w1, "b1": b1, "w2": w2, "b2": b2, "w3": w3, "b3": b3}


def reference_forward(x, p):
    h1 = jnp.maximum(x @ p["w1"] + p["b1"], 0.0)
    h2 = jnp.maximum(h1 @ p["w2"] + p["b2"], 0.0)
    return h2 @ p["w3"] + p["b3"]


if __name__ == "__main__":
    key = jax.random.PRNGKey(0)
    k_params, k_x, k_x2 = jax.random.split(key, 3)

    batch = 2
    state_size = 16
    action_size = 4

    params = init_params(k_params, state_size, action_size, hidden=64)
    padded = pad_params(params)

    # Small spec-sized check (batch=2). Tolerances loosened for bf16 MXU
    # inputs / bf16 output (accumulation is still f32).
    x = jax.random.normal(k_x, (batch, state_size), dtype=jnp.float32)
    out = jax.block_until_ready(qnetwork_forward(x, padded))
    ref = reference_forward(x, params)
    assert out.shape == (batch, action_size)
    assert jnp.allclose(out, ref, atol=5e-2, rtol=5e-2)

    # Larger replay-buffer-style batch exercising a multi-step "parallel" grid
    # (2 steps at tile_b=512 -> both TensorCores busy on v7x; weights stay
    # VMEM-resident, single-buffered, across steps).
    big_batch = 1024
    xb = jax.random.normal(k_x2, (big_batch, state_size), dtype=jnp.float32)
    out_b = jax.block_until_ready(qnetwork_forward(xb, padded, tile_b=512))
    ref_b = reference_forward(xb, params)
    assert out_b.shape == (big_batch, action_size)
    assert jnp.allclose(out_b, ref_b, atol=5e-2, rtol=5e-2)

    print("KERNEL_OK")
</pallas_src>

<mosaic_0001>
module attributes {stable_mosaic.version = 11 : i64} {
  func.func @qnet_kernel(%arg0: i32, %arg1: memref<16x16xbf16, #tpu.memory_space<vmem>>, %arg2: memref<16x128xbf16, #tpu.memory_space<vmem>>, %arg3: memref<8x128xf32, #tpu.memory_space<vmem>>, %arg4: memref<128x128xbf16, #tpu.memory_space<vmem>>, %arg5: memref<8x128xf32, #tpu.memory_space<vmem>>, %arg6: memref<128x128xbf16, #tpu.memory_space<vmem>>, %arg7: memref<8x128xf32, #tpu.memory_space<vmem>>, %arg8: memref<16x128xbf16, #tpu.memory_space<vmem>>) attributes {dimension_semantics = [#tpu.dimension_semantics<parallel>], iteration_bounds = array<i64: 1>, scalar_prefetch = 0 : i64, scratch_operands = 0 : i64, tpu.core_type = #tpu.core_type<tc>, window_params = [{transform_indices = @transform_0, window_bounds = array<i64: 16, 16>}, {pipeline_mode = #tpu.pipeline_mode<synchronous>, transform_indices = @transform_1, window_bounds = array<i64: 16, 128>}, {pipeline_mode = #tpu.pipeline_mode<synchronous>, transform_indices = @transform_2, window_bounds = array<i64: 8, 128>}, {pipeline_mode = #tpu.pipeline_mode<synchronous>, transform_indices = @transform_3, window_bounds = array<i64: 128, 128>}, {pipeline_mode = #tpu.pipeline_mode<synchronous>, transform_indices = @transform_4, window_bounds = array<i64: 8, 128>}, {pipeline_mode = #tpu.pipeline_mode<synchronous>, transform_indices = @transform_5, window_bounds = array<i64: 128, 128>}, {pipeline_mode = #tpu.pipeline_mode<synchronous>, transform_indices = @transform_6, window_bounds = array<i64: 8, 128>}, {transform_indices = @transform_7, window_bounds = array<i64: 16, 128>}]} {
    %c0 = arith.constant 0 : index
    %c0_0 = arith.constant 0 : index
    %0 = vector.load %arg1[%c0, %c0_0] : memref<16x16xbf16, #tpu.memory_space<vmem>>, vector<16x16xbf16>
    %c0_1 = arith.constant 0 : index
    %c0_2 = arith.constant 0 : index
    %1 = vector.load %arg2[%c0_1, %c0_2] : memref<16x128xbf16, #tpu.memory_space<vmem>>, vector<16x128xbf16>
    %cst = arith.constant dense<0.000000e+00> : vector<16x128xf32>
    %2 = tpu.matmul %0, %1, %cst {dimension_numbers = #tpu.dot_dimension_numbers<[1], [0], [0], [1], [0, 0, 1, 1], [], []>} : vector<16x16xbf16>, vector<16x128xbf16>, vector<16x128xf32> -> vector<16x128xf32>
    %c0_3 = arith.constant 0 : index
    %c0_4 = arith.constant 0 : index
    %3 = vector.load %arg3[%c0_3, %c0_4] : memref<8x128xf32, #tpu.memory_space<vmem>>, vector<1x128xf32>
    %4 = vector.broadcast %3 : vector<1x128xf32> to vector<16x128xf32>
    %5 = arith.addf %2, %4 : vector<16x128xf32>
    %cst_5 = arith.constant 0.000000e+00 : f32
    %6 = vector.broadcast %cst_5 : f32 to vector<16x128xf32>
    %7 = arith.maximumf %5, %6 : vector<16x128xf32>
    %8 = arith.truncf %7 : vector<16x128xf32> to vector<16x128xbf16>
    %c0_6 = arith.constant 0 : index
    %c0_7 = arith.constant 0 : index
    %9 = vector.load %arg4[%c0_6, %c0_7] : memref<128x128xbf16, #tpu.memory_space<vmem>>, vector<128x128xbf16>
    %cst_8 = arith.constant dense<0.000000e+00> : vector<16x128xf32>
    %10 = tpu.matmul %8, %9, %cst_8 {dimension_numbers = #tpu.dot_dimension_numbers<[1], [0], [0], [1], [0, 0, 1, 1], [], []>} : vector<16x128xbf16>, vector<128x128xbf16>, vector<16x128xf32> -> vector<16x128xf32>
    %c0_9 = arith.constant 0 : index
    %c0_10 = arith.constant 0 : index
    %11 = vector.load %arg5[%c0_9, %c0_10] : memref<8x128xf32, #tpu.memory_space<vmem>>, vector<1x128xf32>
    %12 = vector.broadcast %11 : vector<1x128xf32> to vector<16x128xf32>
    %13 = arith.addf %10, %12 : vector<16x128xf32>
    %cst_11 = arith.constant 0.000000e+00 : f32
    %14 = vector.broadcast %cst_11 : f32 to vector<16x128xf32>
    %15 = arith.maximumf %13, %14 : vector<16x128xf32>
    %16 = arith.truncf %15 : vector<16x128xf32> to vector<16x128xbf16>
    %c0_12 = arith.constant 0 : index
    %c0_13 = arith.constant 0 : index
    %17 = vector.load %arg6[%c0_12, %c0_13] : memref<128x128xbf16, #tpu.memory_space<vmem>>, vector<128x128xbf16>
    %cst_14 = arith.constant dense<0.000000e+00> : vector<16x128xf32>
    %18 = tpu.matmul %16, %17, %cst_14 {dimension_numbers = #tpu.dot_dimension_numbers<[1], [0], [0], [1], [0, 0, 1, 1], [], []>} : vector<16x128xbf16>, vector<128x128xbf16>, vector<16x128xf32> -> vector<16x128xf32>
    %c0_15 = arith.constant 0 : index
    %c0_16 = arith.constant 0 : index
    %19 = vector.load %arg7[%c0_15, %c0_16] : memref<8x128xf32, #tpu.memory_space<vmem>>, vector<1x128xf32>
    %20 = vector.broadcast %19 : vector<1x128xf32> to vector<16x128xf32>
    %21 = arith.addf %18, %20 : vector<16x128xf32>
    %22 = arith.truncf %21 : vector<16x128xf32> to vector<16x128xbf16>
    %c0_17 = arith.constant 0 : index
    %c0_18 = arith.constant 0 : index
    %23 = vector.load %arg8[%c0_17, %c0_18] : memref<16x128xbf16, #tpu.memory_space<vmem>>, vector<16x128xbf16>
    tpu.vector_store %arg8[%c0_17, %c0_18], %22 {strides = array<i32>} : memref<16x128xbf16, #tpu.memory_space<vmem>>, vector<16x128xbf16>,
    return
  }
  func.func @transform_0(%arg0: i32) -> (i32, i32) {
    %c0_i32 = arith.constant 0 : i32
    %c0_i32_0 = arith.constant 0 : i32
    return %arg0, %c0_i32 : i32, i32
  }
  func.func @transform_1(%arg0: i32) -> (i32, i32) {
    %c0_i32 = arith.constant 0 : i32
    %c0_i32_0 = arith.constant 0 : i32
    %c0_i32_1 = arith.constant 0 : i32
    return %c0_i32, %c0_i32_0 : i32, i32
  }
  func.func @transform_2(%arg0: i32) -> (i32, i32) {
    %c0_i32 = arith.constant 0 : i32
    %c0_i32_0 = arith.constant 0 : i32
    %c0_i32_1 = arith.constant 0 : i32
    return %c0_i32, %c0_i32_0 : i32, i32
  }
  func.func @transform_3(%arg0: i32) -> (i32, i32) {
    %c0_i32 = arith.constant 0 : i32
    %c0_i32_0 = arith.constant 0 : i32
    %c0_i32_1 = arith.constant 0 : i32
    return %c0_i32, %c0_i32_0 : i32, i32
  }
  func.func @transform_4(%arg0: i32) -> (i32, i32) {
    %c0_i32 = arith.constant 0 : i32
    %c0_i32_0 = arith.constant 0 : i32
    %c0_i32_1 = arith.constant 0 : i32
    return %c0_i32, %c0_i32_0 : i32, i32
  }
  func.func @transform_5(%arg0: i32) -> (i32, i32) {
    %c0_i32 = arith.constant 0 : i32
    %c0_i32_0 = arith.constant 0 : i32
    %c0_i32_1 = arith.constant 0 : i32
    return %c0_i32, %c0_i32_0 : i32, i32
  }
  func.func @transform_6(%arg0: i32) -> (i32, i32) {
    %c0_i32 = arith.constant 0 : i32
    %c0_i32_0 = arith.constant 0 : i32
    %c0_i32_1 = arith.constant 0 : i32
    return %c0_i32, %c0_i32_0 : i32, i32
  }
  func.func @transform_7(%arg0: i32) -> (i32, i32) {
    %c0_i32 = arith.constant 0 : i32
    %c0_i32_0 = arith.constant 0 : i32
    return %arg0, %c0_i32 : i32, i32
  }
}

</mosaic_0001>

<llo_original>
// kernel: tpu_custom_call.1
$region0: #{tpu_custom_call.1}
  #allocation0 [shape = 'u32[]', space=smem, size = 0x4, offset = 0x4, fixed_abs, tag = 'smem constant byte address 0x4 - core index']
  #allocation1 [shape = 'u32[144,128]{1,0:T(1,128)}', space=vmem, size = 0x12000, scoped, tag = 'internal scratch']
  %s0 = inlined_call_operand.hbm [shape: bf16[16,16], index: 0, kind: input, shape index: {}]
  %s1 = inlined_call_operand.hbm [shape: bf16[16,128], index: 1, kind: input, shape index: {}]
  %s2 = inlined_call_operand.hbm [shape: f32[8,128], index: 2, kind: input, shape index: {}]
  %s3 = inlined_call_operand.hbm [shape: bf16[128,128], index: 3, kind: input, shape index: {}]
  %s4 = inlined_call_operand.hbm [shape: f32[8,128], index: 4, kind: input, shape index: {}]
  %s5 = inlined_call_operand.hbm [shape: bf16[128,128], index: 5, kind: input, shape index: {}]
  %s6 = inlined_call_operand.vmem [shape: f32[8,128], index: 6, kind: input, shape index: {}]
  %s7 = inlined_call_operand.hbm [shape: bf16[16,128], index: 7, kind: output, shape index: {}]
  %s8 = sld [smem:[#allocation0]]
  $region62: #{tpu_custom_call.1} parent=0
    _
  %s10 = ssub.s32 1, %s8
  %s11 = scalar_select 0, %s10, %s8
  $region1: #{tpu_custom_call.1} parent=0
    #allocation2 [shape = 'u8[4096]{0}', space=vmem, size = 0x1000, scoped, tag = 'input window, operand 0, single buffered']
    #allocation3 [shape = 's32[1]{0}', space=sflag, size = 0x4, scoped, tag = 'scoped memory for tpu_custom_call.1']
    #allocation4 [shape = 's32[1]{0}', space=sflag, size = 0x4, scoped, tag = 'scoped memory for tpu_custom_call.1']
    #allocation5 [shape = 'u8[4096]{0}', space=vmem, size = 0x1000, scoped, tag = 'input window, operand 1, single buffered']
    #allocation6 [shape = 's32[1]{0}', space=sflag, size = 0x4, scoped, tag = 'scoped memory for tpu_custom_call.1']
    #allocation7 [shape = 'u8[4096]{0}', space=vmem, size = 0x1000, scoped, tag = 'input window, operand 2, single buffered']
    #allocation8 [shape = 'u8[32768]{0}', space=vmem, size = 0x8000, scoped, tag = 'input window, operand 3, single buffered']
    #allocation9 [shape = 's32[1]{0}', space=sflag, size = 0x4, scoped, tag = 'scoped memory for tpu_custom_call.1']
    #allocation10 [shape = 'u8[4096]{0}', space=vmem, size = 0x1000, scoped, tag = 'input window, operand 4, single buffered']
    #allocation11 [shape = 'u8[32768]{0}', space=vmem, size = 0x8000, scoped, tag = 'input window, operand 5, single buffered']
    #allocation12 [shape = 's32[1]{0}', space=sflag, size = 0x4, scoped, tag = 'scoped memory for tpu_custom_call.1']
    #allocation13 [shape = 'u8[4096]{0}', space=vmem, size = 0x1000, scoped, tag = 'output window, operand 0, single buffered']
    %12 = vsyncpa [#allocation3], 0
    %13 = vsyncpa [#allocation6], 0
    %14 = vsyncpa [#allocation9], 0
    %15 = vsyncpa [#allocation12], 0
    %16 = vsyncpa [#allocation4], 0
    // Predicated region
    $region2: #{tpu_custom_call.1} parent=1 // pred_check
      _
    $region3: #{tpu_custom_call.1} parent=1 // pred_check_branch
      %18 = sbr.rel (0) target = $region5
    $region4: #{tpu_custom_call.1} parent=1 // pred_region
      %s20 = ssub.s32 128, 128
      %21 = vsyncadd [#allocation3], %s20
      %s22 = sshll.u32 [#allocation2], 4
      %s23 = int_to_ptr.vmem [resolvable:$true] %s22
      %28 = dma.hbm_to_vmem [thread:$0]  %s0, 128, %s23, [#allocation3], 64, 64, 4
    $region5: #{tpu_custom_call.1} parent=1 // pred_fallthru
      _
    // Predicated region
    $region6: #{tpu_custom_call.1} parent=1 // pred_check
      _
    $region7: #{tpu_custom_call.1} parent=1 // pred_check_branch
      %30 = sbr.rel (0) target = $region9
    $region8: #{tpu_custom_call.1} parent=1 // pred_region
      %s32 = ssub.s32 128, 128
      %33 = vsyncadd [#allocation6], %s32
      %s34 = sshll.u32 [#allocation5], 4
      %s35 = int_to_ptr.vmem [resolvable:$true] %s34
      %40 = dma.hbm_to_vmem [thread:$0]  %s1, 128, %s35, [#allocation6], 64, 64, 4
    $region9: #{tpu_custom_call.1} parent=1 // pred_fallthru
      _
    // Predicated region
    $region10: #{tpu_custom_call.1} parent=1 // pred_check
      _
    $region11: #{tpu_custom_call.1} parent=1 // pred_check_branch
      %42 = sbr.rel (0) target = $region13
    $region12: #{tpu_custom_call.1} parent=1 // pred_region
      %s44 = ssub.s32 128, 128
      %45 = vsyncadd [#allocation6], %s44
      %s47 = sshll.u32 [#allocation7], 4
      %s48 = int_to_ptr.vmem [resolvable:$true] %s47
      %50 = dma.hbm_to_vmem [thread:$0]  %s2, 128, %s48, [#allocation6]
    $region13: #{tpu_custom_call.1} parent=1 // pred_fallthru
      _
    // Predicated region
    $region14: #{tpu_custom_call.1} parent=1 // pred_check
      _
    $region15: #{tpu_custom_call.1} parent=1 // pred_check_branch
      %52 = sbr.rel (0) target = $region17
    $region16: #{tpu_custom_call.1} parent=1 // pred_region
      %s54 = ssub.s32 1024, 1024
      %55 = vsyncadd [#allocation9], %s54
      %s56 = sshll.u32 [#allocation8], 4
      %s57 = int_to_ptr.vmem [resolvable:$true] %s56
      %62 = dma.hbm_to_vmem [thread:$0]  %s3, 1024, %s57, [#allocation9], 64, 64, 4
    $region17: #{tpu_custom_call.1} parent=1 // pred_fallthru
      _
    // Predicated region
    $region18: #{tpu_custom_call.1} parent=1 // pred_check
      _
    $region19: #{tpu_custom_call.1} parent=1 // pred_check_branch
      %64 = sbr.rel (0) target = $region21
    $region20: #{tpu_custom_call.1} parent=1 // pred_region
      %s66 = ssub.s32 128, 128
      %67 = vsyncadd [#allocation9], %s66
      %s69 = sshll.u32 [#allocation10], 4
      %s70 = int_to_ptr.vmem [resolvable:$true] %s69
      %72 = dma.hbm_to_vmem [thread:$0]  %s4, 128, %s70, [#allocation9]
    $region21: #{tpu_custom_call.1} parent=1 // pred_fallthru
      _
    // Predicated region
    $region22: #{tpu_custom_call.1} parent=1 // pred_check
      _
    $region23: #{tpu_custom_call.1} parent=1 // pred_check_branch
      %74 = sbr.rel (0) target = $region25
    $region24: #{tpu_custom_call.1} parent=1 // pred_region
      %s76 = ssub.s32 1024, 1024
      %77 = vsyncadd [#allocation12], %s76
      %s78 = sshll.u32 [#allocation11], 4
      %s79 = int_to_ptr.vmem [resolvable:$true] %s78
      %84 = dma.hbm_to_vmem [thread:$0]  %s5, 1024, %s79, [#allocation12], 64, 64, 4
    $region25: #{tpu_custom_call.1} parent=1 // pred_fallthru
      _
    // Predicated region
    $region26: #{tpu_custom_call.1} parent=1 // pred_check
      _
    $region27: #{tpu_custom_call.1} parent=1 // pred_check_branch
      %86 = sbr.rel (0) target = $region29
    $region28: #{tpu_custom_call.1} parent=1 // pred_region
      _
    $region29: #{tpu_custom_call.1} parent=1 // pred_fallthru
      _
    // Predicated region
    $region30: #{tpu_custom_call.1} parent=1 // pred_check
      _
    $region31: #{tpu_custom_call.1} parent=1 // pred_check_branch
      %88 = sbr.rel (0) target = $region33
    $region32: #{tpu_custom_call.1} parent=1 // pred_region
      %89 = dma.done [#allocation3], 128
    $region33: #{tpu_custom_call.1} parent=1 // pred_fallthru
      _
    // Predicated region
    $region34: #{tpu_custom_call.1} parent=1 // pred_check
      _
    $region35: #{tpu_custom_call.1} parent=1 // pred_check_branch
      %91 = sbr.rel (0) target = $region37
    $region36: #{tpu_custom_call.1} parent=1 // pred_region
      %92 = dma.done [#allocation6], 128
    $region37: #{tpu_custom_call.1} parent=1 // pred_fallthru
      _
    // Predicated region
    $region38: #{tpu_custom_call.1} parent=1 // pred_check
      _
    $region39: #{tpu_custom_call.1} parent=1 // pred_check_branch
      %94 = sbr.rel (0) target = $region41
    $region40: #{tpu_custom_call.1} parent=1 // pred_region
      %95 = dma.done [#allocation6], 128
    $region41: #{tpu_custom_call.1} parent=1 // pred_fallthru
      _
    // Predicated region
    $region42: #{tpu_custom_call.1} parent=1 // pred_check
      _
    $region43: #{tpu_custom_call.1} parent=1 // pred_check_branch
      %97 = sbr.rel (0) target = $region45
    $region44: #{tpu_custom_call.1} parent=1 // pred_region
      %98 = dma.done [#allocation9], 1024
    $region45: #{tpu_custom_call.1} parent=1 // pred_fallthru
      _
    // Predicated region
    $region46: #{tpu_custom_call.1} parent=1 // pred_check
      _
    $region47: #{tpu_custom_call.1} parent=1 // pred_check_branch
      %100 = sbr.rel (0) target = $region49
    $region48: #{tpu_custom_call.1} parent=1 // pred_region
      %101 = dma.done [#allocation9], 128
    $region49: #{tpu_custom_call.1} parent=1 // pred_fallthru
      _
    // Predicated region
    $region50: #{tpu_custom_call.1} parent=1 // pred_check
      _
    $region51: #{tpu_custom_call.1} parent=1 // pred_check_branch
      %103 = sbr.rel (0) target = $region53
    $region52: #{tpu_custom_call.1} parent=1 // pred_region
      %104 = dma.done [#allocation12], 1024
    $region53: #{tpu_custom_call.1} parent=1 // pred_fallthru
      _
    %v106 = vld [vmem:[#allocation2] sm:$0xf]
    %v107 = vld [vmem:[#allocation2 + $0x4] sm:$0xf]
    %v108 = vld [vmem:[#allocation5] sm:$0xf]
    %v109 = vld [vmem:[#allocation5 + $0x4] sm:$0xf]
    %v110 = vld [vmem:[#allocation7] sm:$0x1]
    %v111 = vlaneseq
    %v112 = vshrl.u32 %v111, 7
    %v113 = vsub.s32 0, %v112
    %v114 = vrot.slane %v110, %v113
    %v117 = vunpack.c.l.b16 %v106
    %v118 = vunpack.c.l.b16 %v107
    %v119 = vpack.c.b16 %v118, %v117
    %v122 = vunpack.c.l.b16 %v108
    %v123 = vunpack.c.l.b16 %v109
    %v124 = vpack.c.b16 %v123, %v122
    %vm126 = vcmask 130048
    %v128 = vsel %vm126, %v119, 0
    %130 = vmatprep.subr.bf16.mxu0 0
    %131 = vmatpush1.bf16.msra.mxu0 0
    %132 = vmatprep.subr.bf16.mxu0 0
    %133 = vmatpush1.bf16.msra.mxu0 0
    %134 = vmatprep.subr.bf16.mxu0 0
    %135 = vmatpush1.bf16.msra.mxu0 0
    %136 = vmatprep.subr.bf16.mxu0 0
    %137 = vmatpush1.bf16.msra.mxu0 0
    %138 = vmatprep.subr.bf16.mxu0 0
    %139 = vmatpush1.bf16.msra.mxu0 0
    %140 = vmatprep.subr.bf16.mxu0 0
    %141 = vmatpush1.bf16.msra.mxu0 0
    %142 = vmatprep.subr.bf16.mxu0 0
    %143 = vmatpush1.bf16.msra.mxu0 0
    %144 = vmatprep.subr.bf16.mxu0 0
    %145 = vmatpush1.bf16.msra.mxu0 %v124
    %146 = vmatprep.subr.bf16.mxu0 0
    %147 = vmatpush2.bf16.msra.mxu0 0
    %148 = vmatprep.subr.bf16.mxu0 0
    %149 = vmatpush2.bf16.msra.mxu0 0
    %150 = vmatprep.subr.bf16.mxu0 0
    %151 = vmatpush2.bf16.msra.mxu0 0
    %152 = vmatprep.subr.bf16.mxu0 0
    %153 = vmatpush2.bf16.msra.mxu0 0
    %154 = vmatprep.subr.bf16.mxu0 0
    %155 = vmatpush2.bf16.msra.mxu0 0
    %156 = vmatprep.subr.bf16.mxu0 0
    %157 = vmatpush2.bf16.msra.mxu0 0
    %158 = vmatprep.subr.bf16.mxu0 0
    %159 = vmatpush2.bf16.msra.mxu0 0
    %160 = vmatprep.subr.bf16.mxu0 0
    %161 = vmatpush2.bf16.msra.mxu0 0
    %162 = vmatprep.mubr.bf16.mxu0 0
    %163 = vmatmul.mubr.bf16.gmra.mxu0 %v128
    %v164 = vpop.f32.mrf.mxu0
    %v165 = vadd.f32 %v114, %v164
    %v166 = vpop.f32.mrf.mxu0
    %v167 = vpop.f32.mrf.mxu0
    %v168 = vadd.f32 %v114, %v167
    %v169 = vpop.f32.mrf.mxu0
    %170 = vdwg.mxu0
    %v171 = vmax.f32 %v165, 0.0
    %v172 = vmax.f32 %v168, 0.0
    %v173 = vpack.c.bf16 %v172, %v171
    %v174 = vld [vmem:[#allocation8] sm:$0xf]
    %v175 = vld [vmem:[#allocation8 + $0x4] sm:$0xf]
    %v176 = vld [vmem:[#allocation8 + $0x8] sm:$0xf]
    %v177 = vld [vmem:[#allocation8 + $0xc] sm:$0xf]
    %v178 = vld [vmem:[#allocation8 + $0x10] sm:$0xf]
    %v179 = vld [vmem:[#allocation8 + $0x14] sm:$0xf]
    %v180 = vld [vmem:[#allocation8 + $0x18] sm:$0xf]
    %v181 = vld [vmem:[#allocation8 + $0x1c] sm:$0xf]
    %v182 = vld [vmem:[#allocation8 + $0x20] sm:$0xf]
    %v183 = vld [vmem:[#allocation8 + $0x24] sm:$0xf]
    %v184 = vld [vmem:[#allocation8 + $0x28] sm:$0xf]
    %v185 = vld [vmem:[#allocation8 + $0x2c] sm:$0xf]
    %v186 = vld [vmem:[#allocation8 + $0x30] sm:$0xf]
    %v187 = vld [vmem:[#allocation8 + $0x34] sm:$0xf]
    %v188 = vld [vmem:[#allocation8 + $0x38] sm:$0xf]
    %v189 = vld [vmem:[#allocation8 + $0x3c] sm:$0xf]
    %v190 = vld [vmem:[#allocation10] sm:$0x1]
    %v191 = vlaneseq
    %v192 = vshrl.u32 %v191, 7
    %v193 = vsub.s32 0, %v192
    %v194 = vrot.slane %v190, %v193
    %v211 = vunpack.c.l.b16 %v174
    %v212 = vunpack.c.l.b16 %v175
    %v213 = vunpack.c.l.b16 %v176
    %v214 = vunpack.c.l.b16 %v177
    %v215 = vunpack.c.l.b16 %v178
    %v216 = vunpack.c.l.b16 %v179
    %v217 = vunpack.c.l.b16 %v180
    %v218 = vunpack.c.l.b16 %v181
    %v219 = vunpack.c.l.b16 %v182
    %v220 = vunpack.c.l.b16 %v183
    %v221 = vunpack.c.l.b16 %v184
    %v222 = vunpack.c.l.b16 %v185
    %v223 = vunpack.c.l.b16 %v186
    %v224 = vunpack.c.l.b16 %v187
    %v225 = vunpack.c.l.b16 %v188
    %v226 = vunpack.c.l.b16 %v189
    %v227 = vpack.c.b16 %v212, %v211
    %v228 = vpack.c.b16 %v214, %v213
    %v229 = vpack.c.b16 %v216, %v215
    %v230 = vpack.c.b16 %v218, %v217
    %v231 = vpack.c.b16 %v220, %v219
    %v232 = vpack.c.b16 %v222, %v221
    %v233 = vpack.c.b16 %v224, %v223
    %v234 = vpack.c.b16 %v226, %v225
    %243 = vmatprep.subr.bf16.mxu0 0
    %244 = vmatpush1.bf16.msra.mxu0 %v234
    %245 = vmatprep.subr.bf16.mxu0 0
    %246 = vmatpush1.bf16.msra.mxu0 %v233
    %247 = vmatprep.subr.bf16.mxu0 0
    %248 = vmatpush1.bf16.msra.mxu0 %v232
    %249 = vmatprep.subr.bf16.mxu0 0
    %250 = vmatpush1.bf16.msra.mxu0 %v231
    %251 = vmatprep.subr.bf16.mxu0 0
    %252 = vmatpush1.bf16.msra.mxu0 %v230
    %253 = vmatprep.subr.bf16.mxu0 0
    %254 = vmatpush1.bf16.msra.mxu0 %v229
    %255 = vmatprep.subr.bf16.mxu0 0
    %256 = vmatpush1.bf16.msra.mxu0 %v228
    %257 = vmatprep.subr.bf16.mxu0 0
    %258 = vmatpush1.bf16.msra.mxu0 %v227
    %259 = vmatprep.subr.bf16.mxu0 0
    %260 = vmatpush2.bf16.msra.mxu0 0
    %261 = vmatprep.subr.bf16.mxu0 0
    %262 = vmatpush2.bf16.msra.mxu0 0
    %263 = vmatprep.subr.bf16.mxu0 0
    %264 = vmatpush2.bf16.msra.mxu0 0
    %265 = vmatprep.subr.bf16.mxu0 0
    %266 = vmatpush2.bf16.msra.mxu0 0
    %267 = vmatprep.subr.bf16.mxu0 0
    %268 = vmatpush2.bf16.msra.mxu0 0
    %269 = vmatprep.subr.bf16.mxu0 0
    %270 = vmatpush2.bf16.msra.mxu0 0
    %271 = vmatprep.subr.bf16.mxu0 0
    %272 = vmatpush2.bf16.msra.mxu0 0
    %273 = vmatprep.subr.bf16.mxu0 0
    %274 = vmatpush2.bf16.msra.mxu0 0
    %275 = vmatprep.mubr.bf16.mxu0 0
    %276 = vmatmul.mubr.bf16.gmra.mxu0 %v173
    %v277 = vpop.f32.mrf.mxu0
    %v278 = vadd.f32 %v194, %v277
    %v279 = vpop.f32.mrf.mxu0
    %v280 = vpop.f32.mrf.mxu0
    %v281 = vadd.f32 %v194, %v280
    %v282 = vpop.f32.mrf.mxu0
    %283 = vdwg.mxu0
    %v284 = vmax.f32 %v278, 0.0
    %v285 = vmax.f32 %v281, 0.0
    %v286 = vpack.c.bf16 %v285, %v284
    %v287 = vld [vmem:[#allocation11] sm:$0xf]
    %v288 = vld [vmem:[#allocation11 + $0x4] sm:$0xf]
    %v289 = vld [vmem:[#allocation11 + $0x8] sm:$0xf]
    %v290 = vld [vmem:[#allocation11 + $0xc] sm:$0xf]
    %v291 = vld [vmem:[#allocation11 + $0x10] sm:$0xf]
    %v292 = vld [vmem:[#allocation11 + $0x14] sm:$0xf]
    %v293 = vld [vmem:[#allocation11 + $0x18] sm:$0xf]
    %v294 = vld [vmem:[#allocation11 + $0x1c] sm:$0xf]
    %v295 = vld [vmem:[#allocation11 + $0x20] sm:$0xf]
    %v296 = vld [vmem:[#allocation11 + $0x24] sm:$0xf]
    %v297 = vld [vmem:[#allocation11 + $0x28] sm:$0xf]
    %v298 = vld [vmem:[#allocation11 + $0x2c] sm:$0xf]
    %v299 = vld [vmem:[#allocation11 + $0x30] sm:$0xf]
    %v300 = vld [vmem:[#allocation11 + $0x34] sm:$0xf]
    %v301 = vld [vmem:[#allocation11 + $0x38] sm:$0xf]
    %v302 = vld [vmem:[#allocation11 + $0x3c] sm:$0xf]
    %v303 = vld [vmem:[%s6] sm:$0x1]
    %v304 = vlaneseq
    %v305 = vshrl.u32 %v304, 7
    %v306 = vsub.s32 0, %v305
    %v307 = vrot.slane %v303, %v306
    %v324 = vunpack.c.l.b16 %v287
    %v325 = vunpack.c.l.b16 %v288
    %v326 = vunpack.c.l.b16 %v289
    %v327 = vunpack.c.l.b16 %v290
    %v328 = vunpack.c.l.b16 %v291
    %v329 = vunpack.c.l.b16 %v292
    %v330 = vunpack.c.l.b16 %v293
    %v331 = vunpack.c.l.b16 %v294
    %v332 = vunpack.c.l.b16 %v295
    %v333 = vunpack.c.l.b16 %v296
    %v334 = vunpack.c.l.b16 %v297
    %v335 = vunpack.c.l.b16 %v298
    %v336 = vunpack.c.l.b16 %v299
    %v337 = vunpack.c.l.b16 %v300
    %v338 = vunpack.c.l.b16 %v301
    %v339 = vunpack.c.l.b16 %v302
    %v340 = vpack.c.b16 %v325, %v324
    %v341 = vpack.c.b16 %v327, %v326
    %v342 = vpack.c.b16 %v329, %v328
    %v343 = vpack.c.b16 %v331, %v330
    %v344 = vpack.c.b16 %v333, %v332
    %v345 = vpack.c.b16 %v335, %v334
    %v346 = vpack.c.b16 %v337, %v336
    %v347 = vpack.c.b16 %v339, %v338
    %356 = vmatprep.subr.bf16.mxu0 0
    %357 = vmatpush1.bf16.msra.mxu0 %v347
    %358 = vmatprep.subr.bf16.mxu0 0
    %359 = vmatpush1.bf16.msra.mxu0 %v346
    %360 = vmatprep.subr.bf16.mxu0 0
    %361 = vmatpush1.bf16.msra.mxu0 %v345
    %362 = vmatprep.subr.bf16.mxu0 0
    %363 = vmatpush1.bf16.msra.mxu0 %v344
    %364 = vmatprep.subr.bf16.mxu0 0
    %365 = vmatpush1.bf16.msra.mxu0 %v343
    %366 = vmatprep.subr.bf16.mxu0 0
    %367 = vmatpush1.bf16.msra.mxu0 %v342
    %368 = vmatprep.subr.bf16.mxu0 0
    %369 = vmatpush1.bf16.msra.mxu0 %v341
    %370 = vmatprep.subr.bf16.mxu0 0
    %371 = vmatpush1.bf16.msra.mxu0 %v340
    %372 = vmatprep.subr.bf16.mxu0 0
    %373 = vmatpush2.bf16.msra.mxu0 0
    %374 = vmatprep.subr.bf16.mxu0 0
    %375 = vmatpush2.bf16.msra.mxu0 0
    %376 = vmatprep.subr.bf16.mxu0 0
    %377 = vmatpush2.bf16.msra.mxu0 0
    %378 = vmatprep.subr.bf16.mxu0 0
    %379 = vmatpush2.bf16.msra.mxu0 0
    %380 = vmatprep.subr.bf16.mxu0 0
    %381 = vmatpush2.bf16.msra.mxu0 0
    %382 = vmatprep.subr.bf16.mxu0 0
    %383 = vmatpush2.bf16.msra.mxu0 0
    %384 = vmatprep.subr.bf16.mxu0 0
    %385 = vmatpush2.bf16.msra.mxu0 0
    %386 = vmatprep.subr.bf16.mxu0 0
    %387 = vmatpush2.bf16.msra.mxu0 0
    %388 = vmatprep.mubr.bf16.mxu0 0
    %389 = vmatmul.mubr.bf16.gmra.mxu0 %v286
    %v390 = vpop.f32.mrf.mxu0
    %v391 = vadd.f32 %v307, %v390
    %v392 = vpop.f32.mrf.mxu0
    %v393 = vpop.f32.mrf.mxu0
    %v394 = vadd.f32 %v307, %v393
    %v395 = vpop.f32.mrf.mxu0
    %396 = vdwg.mxu0
    %v397 = vpack.c.bf16 %v394, %v391
    %v399 = vunpack.c.l.b16 %v397
    %v400 = vunpack.c.h.b16 %v397
    %v401 = vpack.c.b16 %v399, %v399
    %v402 = vpack.c.b16 %v400, %v400
    %405 = vst [vmem:[#allocation13] sm:$0xf] %v401
    %406 = vst [vmem:[#allocation13 + $0x4] sm:$0xf] %v402
    // Predicated region
    $region54: #{tpu_custom_call.1} parent=1 // pred_check
      _
    $region55: #{tpu_custom_call.1} parent=1 // pred_check_branch
      %408 = sbr.rel (0) target = $region57
    $region56: #{tpu_custom_call.1} parent=1 // pred_region
      %s410 = ssub.s32 128, 128
      %411 = vsyncadd [#allocation4], %s410
      %s412 = sshll.u32 [#allocation13], 4
      %s413 = int_to_ptr.vmem [resolvable:$true] %s412
      %418 = dma.vmem_to_hbm [thread:$0]  %s413, 128, %s7, [#allocation4], 64, 64, 4
    $region57: #{tpu_custom_call.1} parent=1 // pred_fallthru
      _
    // Predicated region
    $region58: #{tpu_custom_call.1} parent=1 // pred_check
      _
    $region59: #{tpu_custom_call.1} parent=1 // pred_check_branch
      %420 = sbr.rel (0) target = $region61
    $region60: #{tpu_custom_call.1} parent=1 // pred_region
      %421 = dma.done [#allocation4], 128
    $region61: #{tpu_custom_call.1} parent=1 // pred_fallthru
      _
    %422 = vsyncpa [#allocation3], 1
    %423 = vsyncpa [#allocation6], 1
    %424 = vsyncpa [#allocation9], 1
    %425 = vsyncpa [#allocation12], 1
    %426 = vsyncpa [#allocation4], 1

</llo_original>
